<compile_context>
chip_gen: v7x
topology: tpu7x:2x2x1
jax: 0.10.0
libtpu: 0.0.40
codegen_flags: <defaults>
</compile_context>

<pallas_src>
import jax
import jax.numpy as jnp
from jax import lax
from jax.experimental import pallas as pl
from jax.experimental.pallas import tpu as pltpu

jax.config.update("jax_default_matmul_precision", "highest")

BN_EPS = 1e-5
LANE = 128
CHUNK = 512                 # in-kernel lane chunk: keeps intermediates in vregs
MAX_TILE_N = 512 * 1024     # hard ceiling on batch columns per grid step
_SUBL = 8                   # sublane padding of each per-core stats accumulator
_NSPLIT = 2                 # stats-pass core split (v7x has 2 TensorCores)


def _round_up(a, b):
    return (a + b - 1) // b * b


def _vmem_capacity_bytes():
    try:
        return int(pltpu.get_tpu_info().vmem_capacity_bytes)
    except Exception:
        return 64 << 20          # v7x floor -> conservative everywhere


def _pick_tile(n):
    """Batch columns per grid step, derived from this chip's VMEM capacity.

    Pipeline footprint ~= 128 B per batch column: the (d_in, tile) input block and
    the (1, tile) output block are both sublane-padded to 8 rows and double
    buffered.  Keep tile <= capacity/4/128:
       v5e/v6e (128 MiB) -> 256K columns,  v7x (64 MiB) -> 128K columns.
    """
    cap = _vmem_capacity_bytes()
    tile_cap = max(CHUNK, (cap // 4 // 128) // CHUNK * CHUNK)
    tile = min(MAX_TILE_N, tile_cap)
    tile = min(tile, _round_up(max(n, 1), CHUNK))   # no huge tiles for tiny batches
    return max(tile, CHUNK)


def _vmem_limit_for(tile):
    """Explicit scoped-VMEM limit (v5e's default is only 16 MiB): block footprint
    plus margin, floored at 32 MiB and kept under v7x's 64 MiB physical VMEM."""
    return int(min(max(128 * tile + (8 << 20), 32 << 20), 56 << 20))


# ---------------------------------------------------------------------------
# Pass 1: global input statistics   sum_x = sum_j x_j ,  gram = sum_j x_j x_j^T
# (zero padding of the batch axis does not perturb either accumulator).
# Grid = (core_slice, batch_tile); each core slice owns its own accumulator block.
# ---------------------------------------------------------------------------
def _stats_kernel(xt_ref, sum_ref, gram_ref):
    @pl.when(pl.program_id(1) == 0)
    def _():
        sum_ref[...] = jnp.zeros_like(sum_ref)
        gram_ref[...] = jnp.zeros_like(gram_ref)

    d_in, tile = xt_ref.shape
    n_tri = d_in * (d_in + 1) // 2
    n_chunks = tile // CHUNK

    def body(c, carry):
        s_acc, tri = carry
        off = pl.multiple_of(c * CHUNK, CHUNK)
        xc = xt_ref[:, pl.ds(off, CHUNK)]                        # (d_in, CHUNK)
        s_acc = s_acc + jnp.sum(xc, axis=1, keepdims=True)       # (d_in, 1)
        new_tri = []
        k = 0
        for i in range(d_in):                                    # symmetric Gram:
            for j in range(i, d_in):                             # upper triangle only
                prod = jnp.sum(xc[i:i + 1, :] * xc[j:j + 1, :],
                               axis=1, keepdims=True)            # (1, 1)
                new_tri.append(tri[k] + prod)
                k += 1
        return (s_acc, tuple(new_tri))

    init = (jnp.zeros((d_in, 1), jnp.float32),
            tuple(jnp.zeros((1, 1), jnp.float32) for _ in range(n_tri)))
    s_acc, tri = lax.fori_loop(0, n_chunks, body, init)

    sum_ref[0:d_in, :] += s_acc
    k = 0
    for i in range(d_in):
        for j in range(i, d_in):
            gram_ref[i:i + 1, j:j + 1] += tri[k]
            if j > i:
                gram_ref[j:j + 1, i:i + 1] += tri[k]
            k += 1


def _input_stats(xt, tile, vmem_limit):
    d_in, n_pad = xt.shape
    n_tiles = n_pad // tile                    # guaranteed even by the wrapper
    half = n_tiles // _NSPLIT
    flops = int(n_pad * d_in * (d_in + 3))
    bytes_accessed = int(4 * n_pad * d_in)
    return pl.pallas_call(
        _stats_kernel,
        out_shape=(jax.ShapeDtypeStruct((_NSPLIT * _SUBL, 1), jnp.float32),
                   jax.ShapeDtypeStruct((_NSPLIT * _SUBL, d_in), jnp.float32)),
        grid_spec=pltpu.PrefetchScalarGridSpec(
            num_scalar_prefetch=0,
            grid=(_NSPLIT, half),
            in_specs=[pl.BlockSpec((d_in, tile),
                                   lambda c, t: (0, c * half + t))],
            out_specs=(pl.BlockSpec((_SUBL, 1), lambda c, t: (c, 0)),
                       pl.BlockSpec((_SUBL, d_in), lambda c, t: (c, 0))),
        ),
        compiler_params=pltpu.CompilerParams(
            dimension_semantics=("parallel", "arbitrary"),   # core split, reduction
            vmem_limit_bytes=vmem_limit),
        cost_estimate=pl.CostEstimate(flops=flops, transcendentals=0,
                                      bytes_accessed=bytes_accessed),
    )(xt)


# ---------------------------------------------------------------------------
# Pass 2: fused (layer0 with BN folded in) -> ReLU -> out.
# MXU does the layer-0 contraction; an inner 512-lane chunk loop keeps all
# intermediates in vregs.  Output (1, tile) blocks are lane-dense.
# ---------------------------------------------------------------------------
def _fwd_kernel(xt_ref, p_ref, out_ref):
    p = p_ref[...]                               # (H, d_in + 3), resident
    d_in = p.shape[1] - 3
    w_eff = p[:, :d_in]                          # (H, d_in)
    b_eff = p[:, d_in:d_in + 1]                  # (H, 1)
    w1 = p[:, d_in + 1:d_in + 2]                 # (H, 1)
    b1 = p[0:1, d_in + 2:d_in + 3]               # (1, 1)
    n_chunks = out_ref.shape[-1] // CHUNK

    def body(c, carry):
        off = pl.multiple_of(c * CHUNK, CHUNK)
        xc = xt_ref[:, pl.ds(off, CHUNK)]        # (d_in, CHUNK)
        # layer0 + folded BatchNorm on the MXU (f32, exact precision).
        h = jnp.dot(w_eff, xc, preferred_element_type=jnp.float32,
                    precision=lax.Precision.HIGHEST)
        h = jnp.maximum(h + b_eff, 0.0)          # bias + ReLU on VPU
        # out layer: w1 multiply + cheap sublane reduce over H, then +b1.
        y = jnp.sum(h * w1, axis=0, keepdims=True) + b1          # (1, CHUNK)
        out_ref[:, pl.ds(off, CHUNK)] = y
        return carry

    lax.fori_loop(0, n_chunks, body, 0)


def _fused_forward(xt, pk, tile, vmem_limit):
    d_in, n_pad = xt.shape
    h_dim = pk.shape[0]
    grid = (n_pad // tile,)
    flops = int(2 * n_pad * h_dim * (d_in + 2))
    bytes_accessed = int(4 * n_pad * (d_in + 1) + 4 * pk.size)
    return pl.pallas_call(
        _fwd_kernel,
        out_shape=jax.ShapeDtypeStruct((1, n_pad), jnp.float32),
        grid_spec=pltpu.PrefetchScalarGridSpec(
            num_scalar_prefetch=0,
            grid=grid,
            in_specs=[pl.BlockSpec((d_in, tile), lambda t: (0, t)),     # x^T tile
                      pl.BlockSpec((h_dim, d_in + 3), lambda t: (0, 0))],  # params
            out_specs=pl.BlockSpec((1, tile), lambda t: (0, t)),
        ),
        compiler_params=pltpu.CompilerParams(
            dimension_semantics=("parallel",),      # independent batch tiles
            vmem_limit_bytes=vmem_limit),
        cost_estimate=pl.CostEstimate(flops=flops, transcendentals=0,
                                      bytes_accessed=bytes_accessed),
    )(xt, pk)


# ---------------------------------------------------------------------------
# Wrapper
# ---------------------------------------------------------------------------
def interest_net_forward(x, params, *, tile_n=None):
    """Forward pass of Interest_Net with training-mode BatchNorm statistics."""
    w0, b0, gamma, beta, w1, b1 = params          # PyTorch parameter layouts
    n, d_in = x.shape
    h_dim = w0.shape[0]

    if tile_n is not None:
        tile = max(CHUNK, _round_up(int(tile_n), CHUNK))
    else:
        tile = _pick_tile(n)
    vmem_limit = _vmem_limit_for(tile)
    # multiple of 2*tile: even #tiles for the stats core-split AND >=2 forward
    # grid steps so both v7x TensorCores always get work.
    n_pad = _round_up(max(n, 1), _NSPLIT * tile)

    # Single fused pad+transpose producing the lane-dense x^T (batch -> lanes).
    xt = jnp.zeros((d_in, n_pad), jnp.float32).at[:, :n].set(
        x.T.astype(jnp.float32))

    # --- pass 1: global batch statistics of x (Pallas) ----------------------
    sum_parts, gram_parts = _input_stats(xt, tile, vmem_limit)
    sum_x = sum(sum_parts[k * _SUBL:k * _SUBL + d_in] for k in range(_NSPLIT))
    gram = sum(gram_parts[k * _SUBL:k * _SUBL + d_in] for k in range(_NSPLIT))

    # --- fold BatchNorm into layer0 (tiny O(H*D_in) math) -------------------
    n_f = jnp.float32(n)
    mean_x = sum_x / n_f                                      # (d_in, 1)
    cov = gram / n_f - mean_x @ mean_x.T                      # biased Cov(x)
    mean_h = w0 @ mean_x + b0[:, None]                        # (H, 1)
    var_h = jnp.sum((w0 @ cov) * w0, axis=1, keepdims=True)   # diag(W0 Cov W0^T)
    inv_std = lax.rsqrt(var_h + BN_EPS)                       # (H, 1)
    scale = gamma[:, None] * inv_std                          # (H, 1)
    w_eff = scale * w0                                        # (H, d_in)
    b_eff = scale * (b0[:, None] - mean_h) + beta[:, None]    # (H, 1)

    # pack all pass-2 parameters into one resident (H, d_in+3) block
    pk = jnp.zeros((h_dim, d_in + 3), jnp.float32)
    pk = pk.at[:, :d_in].set(w_eff)
    pk = pk.at[:, d_in].set(b_eff[:, 0])
    pk = pk.at[:, d_in + 1].set(jnp.reshape(w1, (h_dim,)).astype(jnp.float32))
    pk = pk.at[0, d_in + 2].set(jnp.reshape(b1, ()).astype(jnp.float32))

    # --- pass 2: pipelined fused forward over batch tiles --------------------
    y_t = _fused_forward(xt, pk, tile, vmem_limit)            # (1, n_pad)

    # layout-preserving (1, n) -> (n, 1) restore (reshape, not transpose)
    return jnp.reshape(y_t[0, :n], (n, 1))


# ---------------------------------------------------------------------------
# Parameters / reference
# ---------------------------------------------------------------------------
def init_params(key, input_dim=2, hidden_dim=8):
    """PyTorch-style init and layouts: Linear.weight is (out_features, in_features)."""
    k0, k1, k2, k3 = jax.random.split(key, 4)
    lim0 = 1.0 / jnp.sqrt(jnp.float32(input_dim))
    lim1 = 1.0 / jnp.sqrt(jnp.float32(hidden_dim))
    w0 = jax.random.uniform(k0, (hidden_dim, input_dim), jnp.float32, -lim0, lim0)
    b0 = jax.random.uniform(k1, (hidden_dim,), jnp.float32, -lim0, lim0)
    gamma = jnp.ones((hidden_dim,), jnp.float32)   # bn.weight
    beta = jnp.zeros((hidden_dim,), jnp.float32)   # bn.bias
    w1 = jax.random.uniform(k2, (1, hidden_dim), jnp.float32, -lim1, lim1)
    b1 = jax.random.uniform(k3, (1,), jnp.float32, -lim1, lim1)
    return (w0, b0, gamma, beta, w1, b1)


def reference_forward(x, params):
    """Plain-JAX reference (matches the PyTorch module in training mode)."""
    w0, b0, gamma, beta, w1, b1 = params
    h = x @ w0.T + b0
    mean = jnp.mean(h, axis=0, keepdims=True)
    var = jnp.mean((h - mean) ** 2, axis=0, keepdims=True)
    h = (h - mean) / jnp.sqrt(var + BN_EPS) * gamma + beta
    h = jnp.maximum(h, 0.0)
    return h @ w1.T + b1


if __name__ == "__main__":
    key = jax.random.PRNGKey(0)
    k_x, k_p, k_x2 = jax.random.split(key, 3)

    batch, input_dim, hidden_dim = 8, 2, 8
    x = jax.random.normal(k_x, (batch, input_dim), jnp.float32)
    params = init_params(k_p, input_dim=input_dim, hidden_dim=hidden_dim)

    out = jax.block_until_ready(interest_net_forward(x, params))
    ref = reference_forward(x, params)
    assert out.shape == (batch, 1), out.shape
    assert jnp.allclose(out, ref, atol=1e-3, rtol=1e-3), (out, ref)

    # second shape: exercises batch padding, multiple in-kernel chunks and the
    # 2-way grid (both v7x TensorCores) on a non-aligned batch size.
    batch2 = 1000
    x2 = jax.random.normal(k_x2, (batch2, input_dim), jnp.float32)
    out2 = jax.block_until_ready(interest_net_forward(x2, params))
    ref2 = reference_forward(x2, params)
    assert out2.shape == (batch2, 1), out2.shape
    assert jnp.allclose(out2, ref2, atol=1e-3, rtol=1e-3)

    print("KERNEL_OK")
</pallas_src>

<mosaic_0001>
module attributes {stable_mosaic.version = 11 : i64} {
  func.func @_stats_kernel(%arg0: i32, %arg1: i32, %arg2: memref<2x512xf32, #tpu.memory_space<vmem>>, %arg3: memref<8x1xf32, #tpu.memory_space<vmem>>, %arg4: memref<8x2xf32, #tpu.memory_space<vmem>>) attributes {dimension_semantics = [#tpu.dimension_semantics<parallel>, #tpu.dimension_semantics<arbitrary>], iteration_bounds = array<i64: 2, 1>, scalar_prefetch = 0 : i64, scratch_operands = 0 : i64, tpu.core_type = #tpu.core_type<tc>, window_params = [{transform_indices = @transform_0, window_bounds = array<i64: 2, 512>}, {transform_indices = @transform_1, window_bounds = array<i64: 8, 1>}, {transform_indices = @transform_2, window_bounds = array<i64: 8, 2>}]} {
    %c0_i32 = arith.constant 0 : i32
    %0 = arith.cmpi eq, %arg1, %c0_i32 : i32
    %1 = arith.extui %0 : i1 to i32
    %c0_i32_0 = arith.constant 0 : i32
    %2 = arith.cmpi ne, %1, %c0_i32_0 : i32
    scf.if %2 {
      %cst_28 = arith.constant 0.000000e+00 : f32
      %47 = vector.broadcast %cst_28 : f32 to vector<8x1xf32>
      %c0_29 = arith.constant 0 : index
      %c0_30 = arith.constant 0 : index
      %48 = vector.load %arg3[%c0_29, %c0_30] : memref<8x1xf32, #tpu.memory_space<vmem>>, vector<8x1xf32>
      tpu.vector_store %arg3[%c0_29, %c0_30], %47 {strides = array<i32>} : memref<8x1xf32, #tpu.memory_space<vmem>>, vector<8x1xf32>,
      %cst_31 = arith.constant 0.000000e+00 : f32
      %49 = vector.broadcast %cst_31 : f32 to vector<8x2xf32>
      %c0_32 = arith.constant 0 : index
      %c0_33 = arith.constant 0 : index
      %50 = vector.load %arg4[%c0_32, %c0_33] : memref<8x2xf32, #tpu.memory_space<vmem>>, vector<8x2xf32>
      tpu.vector_store %arg4[%c0_32, %c0_33], %49 {strides = array<i32>} : memref<8x2xf32, #tpu.memory_space<vmem>>, vector<8x2xf32>,
    } else {
    }
    %cst = arith.constant 0.000000e+00 : f32
    %3 = vector.broadcast %cst : f32 to vector<2x1xf32>
    %cst_1 = arith.constant 0.000000e+00 : f32
    %4 = vector.broadcast %cst_1 : f32 to vector<1x1xf32>
    %cst_2 = arith.constant 0.000000e+00 : f32
    %5 = vector.broadcast %cst_2 : f32 to vector<1x1xf32>
    %cst_3 = arith.constant 0.000000e+00 : f32
    %6 = vector.broadcast %cst_3 : f32 to vector<1x1xf32>
    %c0_i32_4 = arith.constant 0 : i32
    %c512_i32 = arith.constant 512 : i32
    %7 = arith.muli %c0_i32_4, %c512_i32 : i32
    %8 = tpu.assume_multiple %7, 512 : i32
    %c0 = arith.constant 0 : index
    %9 = arith.index_cast %8 : i32 to index
    %10 = vector.load %arg2[%c0, %9] : memref<2x512xf32, #tpu.memory_space<vmem>>, vector<2x512xf32>
    %cst_5 = arith.constant dense<0.000000e+00> : vector<2xf32>
    %11 = vector.multi_reduction <add>, %10, %cst_5 [1] : vector<2x512xf32> to vector<2xf32>
    %12 = vector.shape_cast %11 : vector<2xf32> to vector<2x1xf32>
    %13 = arith.addf %3, %12 : vector<2x1xf32>
    %14 = vector.extract_strided_slice %10 {offsets = [0, 0], sizes = [1, 512], strides = [1, 1]} : vector<2x512xf32> to vector<1x512xf32>
    %15 = vector.extract_strided_slice %10 {offsets = [0, 0], sizes = [1, 512], strides = [1, 1]} : vector<2x512xf32> to vector<1x512xf32>
    %16 = arith.mulf %14, %15 : vector<1x512xf32>
    %cst_6 = arith.constant dense<0.000000e+00> : vector<1xf32>
    %17 = vector.multi_reduction <add>, %16, %cst_6 [1] : vector<1x512xf32> to vector<1xf32>
    %18 = vector.shape_cast %17 : vector<1xf32> to vector<1x1xf32>
    %19 = arith.addf %4, %18 : vector<1x1xf32>
    %20 = vector.extract_strided_slice %10 {offsets = [0, 0], sizes = [1, 512], strides = [1, 1]} : vector<2x512xf32> to vector<1x512xf32>
    %21 = vector.extract_strided_slice %10 {offsets = [1, 0], sizes = [1, 512], strides = [1, 1]} : vector<2x512xf32> to vector<1x512xf32>
    %22 = arith.mulf %20, %21 : vector<1x512xf32>
    %cst_7 = arith.constant dense<0.000000e+00> : vector<1xf32>
    %23 = vector.multi_reduction <add>, %22, %cst_7 [1] : vector<1x512xf32> to vector<1xf32>
    %24 = vector.shape_cast %23 : vector<1xf32> to vector<1x1xf32>
    %25 = arith.addf %5, %24 : vector<1x1xf32>
    %26 = vector.extract_strided_slice %10 {offsets = [1, 0], sizes = [1, 512], strides = [1, 1]} : vector<2x512xf32> to vector<1x512xf32>
    %27 = vector.extract_strided_slice %10 {offsets = [1, 0], sizes = [1, 512], strides = [1, 1]} : vector<2x512xf32> to vector<1x512xf32>
    %28 = arith.mulf %26, %27 : vector<1x512xf32>
    %cst_8 = arith.constant dense<0.000000e+00> : vector<1xf32>
    %29 = vector.multi_reduction <add>, %28, %cst_8 [1] : vector<1x512xf32> to vector<1xf32>
    %30 = vector.shape_cast %29 : vector<1xf32> to vector<1x1xf32>
    %31 = arith.addf %6, %30 : vector<1x1xf32>
    %c1_i32 = arith.constant 1 : i32
    %c0_9 = arith.constant 0 : index
    %c0_10 = arith.constant 0 : index
    %32 = vector.load %arg3[%c0_9, %c0_10] : memref<8x1xf32, #tpu.memory_space<vmem>>, vector<2x1xf32>
    %33 = arith.addf %32, %13 : vector<2x1xf32>
    %c0_11 = arith.constant 0 : index
    %c0_12 = arith.constant 0 : index
    %34 = vector.load %arg3[%c0_11, %c0_12] : memref<8x1xf32, #tpu.memory_space<vmem>>, vector<2x1xf32>
    tpu.vector_store %arg3[%c0_11, %c0_12], %33 {strides = array<i32>} : memref<8x1xf32, #tpu.memory_space<vmem>>, vector<2x1xf32>,
    %c0_13 = arith.constant 0 : index
    %c0_14 = arith.constant 0 : index
    %35 = vector.load %arg4[%c0_13, %c0_14] : memref<8x2xf32, #tpu.memory_space<vmem>>, vector<1x1xf32>
    %36 = arith.addf %35, %19 : vector<1x1xf32>
    %c0_15 = arith.constant 0 : index
    %c0_16 = arith.constant 0 : index
    %37 = vector.load %arg4[%c0_15, %c0_16] : memref<8x2xf32, #tpu.memory_space<vmem>>, vector<1x1xf32>
    tpu.vector_store %arg4[%c0_15, %c0_16], %36 {strides = array<i32>} : memref<8x2xf32, #tpu.memory_space<vmem>>, vector<1x1xf32>,
    %c0_17 = arith.constant 0 : index
    %c1 = arith.constant 1 : index
    %38 = vector.load %arg4[%c0_17, %c1] : memref<8x2xf32, #tpu.memory_space<vmem>>, vector<1x1xf32>
    %39 = arith.addf %38, %25 : vector<1x1xf32>
    %c0_18 = arith.constant 0 : index
    %c1_19 = arith.constant 1 : index
    %40 = vector.load %arg4[%c0_18, %c1_19] : memref<8x2xf32, #tpu.memory_space<vmem>>, vector<1x1xf32>
    tpu.vector_store %arg4[%c0_18, %c1_19], %39 {strides = array<i32>} : memref<8x2xf32, #tpu.memory_space<vmem>>, vector<1x1xf32>,
    %c1_20 = arith.constant 1 : index
    %c0_21 = arith.constant 0 : index
    %41 = vector.load %arg4[%c1_20, %c0_21] : memref<8x2xf32, #tpu.memory_space<vmem>>, vector<1x1xf32>
    %42 = arith.addf %41, %25 : vector<1x1xf32>
    %c1_22 = arith.constant 1 : index
    %c0_23 = arith.constant 0 : index
    %43 = vector.load %arg4[%c1_22, %c0_23] : memref<8x2xf32, #tpu.memory_space<vmem>>, vector<1x1xf32>
    tpu.vector_store %arg4[%c1_22, %c0_23], %42 {strides = array<i32>} : memref<8x2xf32, #tpu.memory_space<vmem>>, vector<1x1xf32>,
    %c1_24 = arith.constant 1 : index
    %c1_25 = arith.constant 1 : index
    %44 = vector.load %arg4[%c1_24, %c1_25] : memref<8x2xf32, #tpu.memory_space<vmem>>, vector<1x1xf32>
    %45 = arith.addf %44, %31 : vector<1x1xf32>
    %c1_26 = arith.constant 1 : index
    %c1_27 = arith.constant 1 : index
    %46 = vector.load %arg4[%c1_26, %c1_27] : memref<8x2xf32, #tpu.memory_space<vmem>>, vector<1x1xf32>
    tpu.vector_store %arg4[%c1_26, %c1_27], %45 {strides = array<i32>} : memref<8x2xf32, #tpu.memory_space<vmem>>, vector<1x1xf32>,
    return
  }
  func.func @transform_0(%arg0: i32, %arg1: i32) -> (i32, i32) {
    %c1_i32 = arith.constant 1 : i32
    %0 = arith.muli %arg0, %c1_i32 : i32
    %1 = arith.addi %0, %arg1 : i32
    %c0_i32 = arith.constant 0 : i32
    %c0_i32_0 = arith.constant 0 : i32
    return %c0_i32, %1 : i32, i32
  }
  func.func @transform_1(%arg0: i32, %arg1: i32) -> (i32, i32) {
    %c0_i32 = arith.constant 0 : i32
    %c0_i32_0 = arith.constant 0 : i32
    return %arg0, %c0_i32 : i32, i32
  }
  func.func @transform_2(%arg0: i32, %arg1: i32) -> (i32, i32) {
    %c0_i32 = arith.constant 0 : i32
    %c0_i32_0 = arith.constant 0 : i32
    return %arg0, %c0_i32 : i32, i32
  }
}

</mosaic_0001>

<llo_original>
// kernel: tpu_custom_call.1
$region0: #{tpu_custom_call.1}
  #allocation0 [shape = 'u32[]', space=smem, size = 0x4, offset = 0x4, fixed_abs, tag = 'smem constant byte address 0x4 - core index']
  #allocation1 [shape = 'u32[144,128]{1,0:T(1,128)}', space=vmem, size = 0x12000, scoped, tag = 'internal scratch']
  %s0 = inlined_call_operand.hbm [shape: f32[2,1024], index: 0, kind: input, shape index: {}]
  %s1 = inlined_call_operand.vmem [shape: f32[16,1], index: 1, kind: output, shape index: {0}]
  %s2 = inlined_call_operand.vmem [shape: f32[16,2], index: 2, kind: output, shape index: {1}]
  %3 = xla_tuple %s1, %s2
  %s4 = sld [smem:[#allocation0]]
  $region53: #{tpu_custom_call.1} parent=0
    _
  %s6 = ssub.s32 1, %s4
  %s7 = scalar_select 0, %s6, %s4
  $region1: #{tpu_custom_call.1} parent=0
    #allocation2 [shape = 'u8[8192]{0}', space=vmem, size = 0x2000, scoped, tag = 'input window, operand 0']
    #allocation3 [shape = 's32[2]{0}', space=sflag, size = 0x8, scoped, tag = 'scoped memory for tpu_custom_call.1']
    %8 = vsyncpa [#allocation3], 0
    %s9 = scalar_lea.sflag [#allocation3], 1
    %10 = vsyncpa %s9, 0
    loop: start=0, step=1, limit=4
    $region2: #{tpu_custom_call.1} parent=1 // loop_pre_header
      _
    $region3: #{tpu_custom_call.1} parent=1 // loop_header
      %s12 = sphi 0, %s16
      %p13 = scmp.ge.s32.totalorder %s12, 4
      %s19 = sphi 0, %s31
      %s20 = sphi 0, %s27
      %s21 = sphi 0, %s19
      %s22 = sphi 0, %s20
      %s23 = sphi 0, %s21
      %s24 = sphi 0, %s22
      %s36 = sphi 0, %s38
      %s39 = sphi 0, %s36
      %s40 = sphi 0, %s39
      %s56 = sphi 0, %s40
      %s62 = sphi 0, %s64
      %s65 = sphi 0, %s62
      %s66 = sphi 0, %s65
      %s82 = sphi 0, %s66
      %s88 = sphi 0, %s90
      %s91 = sphi 0, %s88
      %s92 = sphi 0, %s91
      %s108 = sphi 0, %s92
    $region4: #{tpu_custom_call.1} parent=1 // loop_header_branch
      %15 = sbr.rel (%p13) target = $region8
    $region5: #{tpu_custom_call.1} parent=1 // loop_body
      %s17 = ssub.s32 %s12, 1
      %s18 = ssub.s32 %s12, 2
      %s25 = sadd.s32 1, %s20
      %p26 = scmp.ge.s32.totalorder %s25, 1
      %s27 = scalar_select %p26, 0, %s25
      %s28 = sadd.s32 1, %s19
      %s29 = scalar_select %p26, %s28, %s19
      %p30 = scmp.ge.s32.totalorder %s29, 2
      %s31 = scalar_select %p30, 0, %s29
      %s32 = sadd.s32 %s19, %s20
      %s33 = sadd.s32 %s31, %s27
      %s34 = ssub.s32 %s32, %s33
      %p35 = scmp.eq.s32.totalorder %s34, 0
      %s37 = sadd.s32 %s36, 1
      %s38 = scalar_select %p35, %s36, %s37
      %p41 = pneg %p35
      %p42 = scmp.eq.s32.totalorder %s12, 1
      %p43 = por %p41, %p42
      %p44 = scmp.ne.s32.totalorder %s36, %s39
      %p45 = scmp.eq.s32.totalorder %s12, 0
      %p46 = por %p44, %p45
      %p47 = scmp.ne.s32.totalorder %s36, %s39
      %p48 = scmp.eq.s32.totalorder %s17, 1
      %p49 = por %p47, %p48
      %p50 = scmp.ne.s32.totalorder %s39, %s40
      %p51 = scmp.eq.s32.totalorder %s17, 0
      %p52 = por %p50, %p51
      %p53 = scmp.ne.s32.totalorder %s39, %s40
      %p54 = scmp.eq.s32.totalorder %s18, 1
      %p55 = por %p53, %p54
      %p57 = scmp.ne.s32.totalorder %s40, %s56
      %p58 = scmp.eq.s32.totalorder %s18, 0
      %p59 = por %p57, %p58
      %s60 = ssub.s32 %s19, %s31
      %p61 = scmp.eq.s32.totalorder %s60, 0
      %s63 = sadd.s32 %s62, 1
      %s64 = scalar_select %p61, %s62, %s63
      %p67 = pneg %p61
      %p68 = scmp.eq.s32.totalorder %s12, 1
      %p69 = por %p67, %p68
      %p70 = scmp.ne.s32.totalorder %s62, %s65
      %p71 = scmp.eq.s32.totalorder %s12, 0
      %p72 = por %p70, %p71
      %p73 = scmp.ne.s32.totalorder %s62, %s65
      %p74 = scmp.eq.s32.totalorder %s17, 1
      %p75 = por %p73, %p74
      %p76 = scmp.ne.s32.totalorder %s65, %s66
      %p77 = scmp.eq.s32.totalorder %s17, 0
      %p78 = por %p76, %p77
      %p79 = scmp.ne.s32.totalorder %s65, %s66
      %p80 = scmp.eq.s32.totalorder %s18, 1
      %p81 = por %p79, %p80
      %p83 = scmp.ne.s32.totalorder %s66, %s82
      %p84 = scmp.eq.s32.totalorder %s18, 0
      %p85 = por %p83, %p84
      %s86 = ssub.s32 %s19, %s31
      %p87 = scmp.eq.s32.totalorder %s86, 0
      %s89 = sadd.s32 %s88, 1
      %s90 = scalar_select %p87, %s88, %s89
      %p93 = pneg %p87
      %p94 = scmp.eq.s32.totalorder %s12, 1
      %p95 = por %p93, %p94
      %p96 = scmp.ne.s32.totalorder %s88, %s91
      %p97 = scmp.eq.s32.totalorder %s12, 0
      %p98 = por %p96, %p97
      %p99 = scmp.ne.s32.totalorder %s88, %s91
      %p100 = scmp.eq.s32.totalorder %s17, 1
      %p101 = por %p99, %p100
      %p102 = scmp.ne.s32.totalorder %s91, %s92
      %p103 = scmp.eq.s32.totalorder %s17, 0
      %p104 = por %p102, %p103
      %p105 = scmp.ne.s32.totalorder %s91, %s92
      %p106 = scmp.eq.s32.totalorder %s18, 1
      %p107 = por %p105, %p106
      %p109 = scmp.ne.s32.totalorder %s92, %s108
      %p110 = scmp.eq.s32.totalorder %s18, 0
      %p111 = por %p109, %p110
      %p112 = scmp.le.s32.totalorder 1, %s12
      %p113 = scmp.lt.s32.totalorder %s12, 3
      %p114 = pnand %p112, %p113
      %p115 = pneg %p114
      // Predicated region
      $region9: #{tpu_custom_call.1} parent=5 // pred_check
        _
      $region10: #{tpu_custom_call.1} parent=5 // pred_check_branch
        %117 = sbr.rel (%p114) target = $region12
      $region11: #{tpu_custom_call.1} parent=5 // pred_region
        %s118 = ssub.s32 %s12, 1
      $region12: #{tpu_custom_call.1} parent=5 // pred_fallthru
        _
      %p119 = scmp.lt.s32.totalorder %s12, 2
      // Predicated region
      $region13: #{tpu_custom_call.1} parent=5 // pred_check
        %p120 = pneg %p119
      $region14: #{tpu_custom_call.1} parent=5 // pred_check_branch
        %122 = sbr.rel (%p120) target = $region16
      $region15: #{tpu_custom_call.1} parent=5 // pred_region
        // Predicated region
        $region17: #{tpu_custom_call.1} parent=15 // pred_check
          %p123 = pneg %p46
        $region18: #{tpu_custom_call.1} parent=15 // pred_check_branch
          %125 = sbr.rel (%p123) target = $region20
        $region19: #{tpu_custom_call.1} parent=15 // pred_region
          %s126 = sand.u32 %s36, 1
          %s127 = scalar_lea.sflag [#allocation3], %s126
          %s128 = sand.u32 %s36, 1
          %s129 = smul.addr %s128, 8
          %s130 = scalar_lea.vmem [#allocation2], %s129
          %s131 = sadd.s32 %s19, %s20
          %s132 = smul.u32 4, %s131
          %s134 = ssub.s32 128, 128
          %135 = vsyncadd %s127, %s134
          %s136 = smul.addr %s132, 32
          %s137 = scalar_lea.hbm %s0, %s136
          %s139 = sshll.u32 %s130, 4
          %s140 = int_to_ptr.vmem [resolvable:$true] %s139
          %142 = dma.hbm_to_vmem [thread:$0]  %s137, 128, %s140, %s127
        $region20: #{tpu_custom_call.1} parent=15 // pred_fallthru
          _
      $region16: #{tpu_custom_call.1} parent=5 // pred_fallthru
        _
      %p143 = scmp.le.s32.totalorder 1, %s12
      %p144 = scmp.lt.s32.totalorder %s12, 3
      %p145 = pnand %p143, %p144
      %p146 = pneg %p145
      // Predicated region
      $region21: #{tpu_custom_call.1} parent=5 // pred_check
        _
      $region22: #{tpu_custom_call.1} parent=5 // pred_check_branch
        %148 = sbr.rel (%p145) target = $region24
      $region23: #{tpu_custom_call.1} parent=5 // pred_region
        %s149 = ssub.s32 %s12, 1
        %s150 = sand.u32 %s39, 1
        %s151 = scalar_lea.sflag [#allocation3], %s150
        %s152 = sand.u32 %s39, 1
        %s153 = smul.addr %s152, 8
        %s154 = scalar_lea.vmem [#allocation2], %s153
        // Predicated region
        $region25: #{tpu_custom_call.1} parent=23 // pred_check
          %p155 = pneg %p52
        $region26: #{tpu_custom_call.1} parent=23 // pred_check_branch
          %157 = sbr.rel (%p155) target = $region28
        $region27: #{tpu_custom_call.1} parent=23 // pred_region
          %158 = dma.done %s151, 128
        $region28: #{tpu_custom_call.1} parent=23 // pred_fallthru
          _
        %s159 = sand.u32 %s39, 1
        %s160 = scalar_lea.sflag [#allocation3], %s159
        %s161 = sand.u32 %s39, 1
        %s162 = smul.addr %s161, 8
        %s163 = scalar_lea.vmem [#allocation2], %s162
        %p164 = pneg %p52
        %p165 = pneg %p49
        %p166 = pneg %p78
        %p167 = pneg %p75
        %p168 = scmp.lt.s32.totalorder %s21, 1
        %s169 = scalar_select %p168, %s21, 1
        %s170 = smul.addr %s169, 8
        %s171 = scalar_lea.vmem %s1, %s170
        %p172 = pneg %p104
        %p173 = pneg %p101
        %p174 = scmp.lt.s32.totalorder %s21, 1
        %s175 = scalar_select %p174, %s21, 1
        %s176 = smul.addr %s175, 8
        %s177 = scalar_lea.vmem %s2, %s176
        %s178 = sadd.s32 %s21, %s22
        %s179 = smul.u32 4, %s178
        %p180 = scmp.lt.s32.totalorder %s21, 1
        %s181 = scalar_select %p180, %s21, 1
        %s182 = smul.addr %s181, 8
        %s183 = scalar_lea.vmem %s1, %s182
        %p184 = scmp.lt.s32.totalorder %s21, 1
        %s185 = scalar_select %p184, %s21, 1
        %s186 = smul.addr %s185, 8
        %s187 = scalar_lea.vmem %s2, %s186
        %p188 = scmp.eq.s32.totalorder %s22, 0
        // Predicated region
        $region29: #{tpu_custom_call.1} parent=23 // pred_check
          %p189 = pneg %p188
        $region30: #{tpu_custom_call.1} parent=23 // pred_check_branch
          %191 = sbr.rel (%p189) target = $region32
        $region31: #{tpu_custom_call.1} parent=23 // pred_region
          %vm192 = vcmask 7168
          %193 = vst.msk [vmem:[%s183] sm:$0xff] %vm192, 0.0
          %vm194 = vcmask 15360
          %195 = vst.msk [vmem:[%s187] sm:$0xff] %vm194, 0.0
        $region32: #{tpu_custom_call.1} parent=23 // pred_fallthru
          _
        %v196 = vld [vmem:[%s154] sm:$0xff]
        %v198 = vcombine.high %v196, %v196
        %v200 = vunpack.c.l.s4 1983009808
        %v201 = vunpack.c.0.s8 %v200
        %v202 = vlaneseq
        %v203 = vshrl.u32 %v202, 7
        %v204 = vsub.s32 %v201, %v203
        %v205 = vrot.slane %v196, %v204
        %v207 = vunpack.c.l.s4 1983009808
        %v208 = vunpack.c.0.s8 %v207
        %v209 = vlaneseq
        %v210 = vshrl.u32 %v209, 7
        %v211 = vsub.s32 %v208, %v210
        %v212 = vrot.slane %v198, %v211
        %v213 = vcombine.high %v205, %v205
        %v214 = vcombine.high %v212, %v212
        %vm219 = vcmask 1041408
        %v220 = vsel %vm219, %v205, 0.0
        %v221 = vsel %vm219, %v213, 0.0
        %v222 = vadd.f32 %v220, %v221
        %v223 = vsel %vm219, %v212, 0.0
        %v224 = vadd.f32 %v222, %v223
        %v225 = vsel %vm219, %v214, 0.0
        %v226 = vadd.f32 %v224, %v225
        %227 = vadd.xlane.f32.xlu0 %v226
        %v228 = vpop.xlane.xlu0 %227
        %v229 = vadd.f32 %v228, 0.0
        %v230 = vmul.f32 %v196, %v196
        %v232 = vlaneseq
        %v233 = vshrl.u32 %v232, 7
        %v234 = vsub.s32 0, %v233
        %v235 = vrot.slane %v230, %v234
        %v236 = vlaneseq
        %v237 = vshrl.u32 %v236, 7
        %v238 = vsub.s32 2, %v237
        %v239 = vrot.slane %v230, %v238
        %v240 = vlaneseq
        %v241 = vshrl.u32 %v240, 7
        %v242 = vsub.s32 4, %v241
        %v243 = vrot.slane %v230, %v242
        %v244 = vlaneseq
        %v245 = vshrl.u32 %v244, 7
        %v246 = vsub.s32 6, %v245
        %v247 = vrot.slane %v230, %v246
        %vm252 = vcmask 1040384
        %v253 = vsel %vm252, %v235, 0.0
        %v254 = vsel %vm252, %v239, 0.0
        %v255 = vadd.f32 %v253, %v254
        %v256 = vsel %vm252, %v243, 0.0
        %v257 = vadd.f32 %v255, %v256
        %v258 = vsel %vm252, %v247, 0.0
        %v259 = vadd.f32 %v257, %v258
        %260 = vadd.xlane.f32.xlu0 %v259
        %v261 = vpop.xlane.xlu0 %260
        %v262 = vadd.f32 %v261, 0.0
        %v263 = vrot.slane %v196, 7
        %v264 = vrot.slane %v263, 2
        %v266 = vmul.f32 %v196, %v264
        %v268 = vlaneseq
        %v269 = vshrl.u32 %v268, 7
        %v270 = vsub.s32 0, %v269
        %v271 = vrot.slane %v266, %v270
        %v272 = vlaneseq
        %v273 = vshrl.u32 %v272, 7
        %v274 = vsub.s32 2, %v273
        %v275 = vrot.slane %v266, %v274
        %v276 = vlaneseq
        %v277 = vshrl.u32 %v276, 7
        %v278 = vsub.s32 4, %v277
        %v279 = vrot.slane %v266, %v278
        %v280 = vlaneseq
        %v281 = vshrl.u32 %v280, 7
        %v282 = vsub.s32 6, %v281
        %v283 = vrot.slane %v266, %v282
        %v288 = vsel %vm252, %v271, 0.0
        %v289 = vsel %vm252, %v275, 0.0
        %v290 = vadd.f32 %v288, %v289
        %v291 = vsel %vm252, %v279, 0.0
        %v292 = vadd.f32 %v290, %v291
        %v293 = vsel %vm252, %v283, 0.0
        %v294 = vadd.f32 %v292, %v293
        %295 = vadd.xlane.f32.xlu0 %v294
        %v296 = vpop.xlane.xlu0 %295
        %v297 = vadd.f32 %v296, 0.0
        %v298 = vlaneseq
        %v299 = vshrl.u32 %v298, 7
        %v300 = vsub.s32 1, %v299
        %v301 = vrot.slane %v230, %v300
        %v302 = vlaneseq
        %v303 = vshrl.u32 %v302, 7
        %v304 = vsub.s32 3, %v303
        %v305 = vrot.slane %v230, %v304
        %v306 = vlaneseq
        %v307 = vshrl.u32 %v306, 7
        %v308 = vsub.s32 5, %v307
        %v309 = vrot.slane %v230, %v308
        %v310 = vlaneseq
        %v311 = vshrl.u32 %v310, 7
        %v312 = vsub.s32 7, %v311
        %v313 = vrot.slane %v230, %v312
        %vm318 = vcmask 1041409
        %v319 = vsel %vm318, %v301, 0.0
        %v320 = vsel %vm318, %v305, 0.0
        %v321 = vadd.f32 %v319, %v320
        %v322 = vsel %vm318, %v309, 0.0
        %v323 = vadd.f32 %v321, %v322
        %v324 = vsel %vm318, %v313, 0.0
        %v325 = vadd.f32 %v323, %v324
        %326 = vadd.xlane.f32.xlu0 %v325
        %v327 = vpop.xlane.xlu0 %326
        %v328 = vadd.f32 %v327, 0.0
        %v329 = vld [vmem:[%s183] sm:$0x3]
        %v330 = vadd.f32 %v329, %v229
        %vm331 = vcmask 1024
        %332 = vst.msk [vmem:[%s183] sm:$0x3] %vm331, %v330
        %v333 = vld [vmem:[%s187] sm:$0x1]
        %v334 = vadd.f32 %v333, %v262
        %vm335 = vcmask 0
        %336 = vst.msk [vmem:[%s187] sm:$0x1] %vm335, %v334
        %v337 = vld [vmem:[%s187] sm:$0x1]
        %v338 = vadd.f32 %v337, %v297
        %vm339 = vcmask 8200
        %340 = vst.msk [vmem:[%s187] sm:$0x1] %vm339, %v338
        %v341 = vld [vmem:[%s187 + $0x1] sm:$0x1]
        %v342 = vadd.f32 %v341, %v297
        %343 = vst.msk [vmem:[%s187 + $0x1] sm:$0x1] %vm335, %v342
        %v344 = vld [vmem:[%s187 + $0x1] sm:$0x1]
        %v346 = vrot.slane %v328, 1
        %v348 = vadd.f32 %v344, %v346
        %349 = vst.msk [vmem:[%s187 + $0x1] sm:$0x1] %vm339, %v348
        %p350 = scmp.lt.s32.totalorder %s21, 1
        %s351 = scalar_select %p350, %s21, 1
        %s352 = smul.addr %s351, 8
        %s353 = scalar_lea.vmem %s1, %s352
        %p354 = scmp.lt.s32.totalorder %s21, 1
        %s355 = scalar_select %p354, %s21, 1
        %s356 = smul.addr %s355, 8
        %s357 = scalar_lea.vmem %s2, %s356
        // Predicated region
        $region33: #{tpu_custom_call.1} parent=23 // pred_check
          %p358 = pneg %p75
        $region34: #{tpu_custom_call.1} parent=23 // pred_check_branch
          %360 = sbr.rel (%p358) target = $region36
        $region35: #{tpu_custom_call.1} parent=23 // pred_region
          _
        $region36: #{tpu_custom_call.1} parent=23 // pred_fallthru
          _
        // Predicated region
        $region37: #{tpu_custom_call.1} parent=23 // pred_check
          %p361 = pneg %p101
        $region38: #{tpu_custom_call.1} parent=23 // pred_check_branch
          %363 = sbr.rel (%p361) target = $region40
        $region39: #{tpu_custom_call.1} parent=23 // pred_region
          _
        $region40: #{tpu_custom_call.1} parent=23 // pred_fallthru
          _
      $region24: #{tpu_custom_call.1} parent=5 // pred_fallthru
        _
      %p364 = scmp.le.s32.totalorder 2, %s12
      // Predicated region
      $region41: #{tpu_custom_call.1} parent=5 // pred_check
        %p365 = pneg %p364
      $region42: #{tpu_custom_call.1} parent=5 // pred_check_branch
        %367 = sbr.rel (%p365) target = $region44
      $region43: #{tpu_custom_call.1} parent=5 // pred_region
        %s368 = ssub.s32 %s12, 2
        // Predicated region
        $region45: #{tpu_custom_call.1} parent=43 // pred_check
          %p369 = pneg %p81
        $region46: #{tpu_custom_call.1} parent=43 // pred_check_branch
          %371 = sbr.rel (%p369) target = $region48
        $region47: #{tpu_custom_call.1} parent=43 // pred_region
          %p372 = scmp.lt.s32.totalorder %s23, 1
          %s373 = scalar_select %p372, %s23, 1
          %s374 = smul.addr %s373, 8
          %s375 = scalar_lea.vmem %s1, %s374
        $region48: #{tpu_custom_call.1} parent=43 // pred_fallthru
          _
        // Predicated region
        $region49: #{tpu_custom_call.1} parent=43 // pred_check
          %p376 = pneg %p107
        $region50: #{tpu_custom_call.1} parent=43 // pred_check_branch
          %378 = sbr.rel (%p376) target = $region52
        $region51: #{tpu_custom_call.1} parent=43 // pred_region
          %p379 = scmp.lt.s32.totalorder %s23, 1
          %s380 = scalar_select %p379, %s23, 1
          %s381 = smul.addr %s380, 8
          %s382 = scalar_lea.vmem %s2, %s381
        $region52: #{tpu_custom_call.1} parent=43 // pred_fallthru
          _
      $region44: #{tpu_custom_call.1} parent=5 // pred_fallthru
        _
    $region6: #{tpu_custom_call.1} parent=1 // loop_footer
      %s16 = sadd.s32 1, %s12
    $region7: #{tpu_custom_call.1} parent=1 // loop_footer_branch
      %11 = sbr.rel target = $region3
    $region8: #{tpu_custom_call.1} parent=1 // loop_exit
      _
    %383 = vsyncpa [#allocation3], 1
    %s384 = scalar_lea.sflag [#allocation3], 1
    %385 = vsyncpa %s384, 1

</llo_original>
